<compile_context>
chip_gen: v7x
topology: tpu7x:2x2x1
jax: 0.10.0
libtpu: 0.0.40
codegen_flags: <defaults>
</compile_context>

<pallas_src>
import functools
import math

import jax
import jax.numpy as jnp
from jax.experimental import pallas as pl
from jax.experimental.pallas import tpu as pltpu


# ---------------------------------------------------------------------------
# PE table (the module's register_buffer), precomputed once in plain JAX.
# ---------------------------------------------------------------------------
def make_pe_table(d_model, max_len, dtype=jnp.float32):
    """Reproduces the PyTorch buffer: pe[:, 0::2] = sin, pe[:, 1::2] = cos."""
    position = jnp.arange(max_len, dtype=jnp.float32)[:, None]            # (L, 1)
    div_term = jnp.exp(jnp.arange(0, d_model, 2, dtype=jnp.float32)
                       * (-math.log(10000.0) / d_model))                  # (D/2,)
    angles = position * div_term                                          # (L, D/2)
    pe = jnp.stack([jnp.sin(angles), jnp.cos(angles)], axis=-1)           # (L, D/2, 2)
    return pe.reshape(max_len, d_model).astype(dtype)                     # interleaved sin/cos


# ---------------------------------------------------------------------------
# Kernels
# ---------------------------------------------------------------------------
def _pe_add_2d_kernel(x_ref, pe_ref, o_ref, *, batch):
    # x_ref / o_ref: (seq_tile, B*D) lane-dense slab; pe_ref: (seq_tile, D).
    # PE already in the activation dtype; replicate across the batch in-kernel.
    o_ref[...] = x_ref[...] + jnp.tile(pe_ref[...], (1, batch))


def _pe_add_3d_kernel(x_ref, pe_ref, o_ref):
    # Fallback path for huge B*D rows.  x_ref/o_ref: (st, bt, D); pe_ref: (st, D).
    o_ref[...] = x_ref[...] + pe_ref[...][:, None, :]


# ---------------------------------------------------------------------------
# Tiling policy
# ---------------------------------------------------------------------------
def _round_up(x, m):
    return ((x + m - 1) // m) * m


def _vmem_policy():
    """Generation-aware (tiling_budget_bytes, vmem_limit_bytes, prefer_even_steps)."""
    try:
        cap = int(pltpu.get_tpu_info().vmem_capacity_bytes)
    except Exception:
        cap = 64 << 20                         # conservative (v7x-sized) fallback
    if cap >= (100 << 20):                     # v5e / v6e: 128 MiB physical, 1 TensorCore
        return 48 << 20, 64 << 20, False
    # v7x-class: 64 MiB physical per TC, 2 TCs -> keep pipelining headroom,
    # and prefer even grid-step counts so both cores get equal work.
    return 24 << 20, 48 << 20, True


def _choose_seq_tile(S, per_row_bytes, budget_bytes, prefer_even_steps):
    """Seq-tile height for the lane-dense (S, B*D) path, or None if even a
    minimal 8-row double-buffered slab exceeds the budget (-> batch-tiled path).
    Returned tile is a multiple of 8 (or the full extent S)."""
    max_rows = budget_bytes // (2 * per_row_bytes)        # /2: 2-deep pipelining
    if max_rows < min(S, 8):
        return None
    if not prefer_even_steps or S < 16:
        # Single-TC chip (or too small to split): biggest block that fits.
        return min(S, max(8, (max_rows // 8) * 8))
    # v7x: pick the largest tile that fits AND yields an even number of grid steps.
    t_cap = max(8, min((max_rows // 8) * 8, _round_up(S, 8)))
    n0 = max(2, pl.cdiv(S, t_cap))
    for n in range(n0, n0 + 9):
        if n % 2:
            continue
        t = _round_up(pl.cdiv(S, n), 8)
        if t <= t_cap and pl.cdiv(S, t) == n:
            return t
    return t_cap


# ---------------------------------------------------------------------------
# Wrapper
# ---------------------------------------------------------------------------
def positional_encoding(x, pe_table, *, seq_tile=None, vmem_budget_bytes=None):
    """x: (S, B, D); pe_table: (>=S, D).  Returns x + pe_table[:S][:, None, :].

    For the in-place alias (input_output_aliases={0: 0}) to avoid a defensive
    copy, donate x at the caller's jit boundary; x must not be reused after.
    """
    S, B, D = x.shape
    assert pe_table.shape[0] >= S and pe_table.shape[1] == D, (pe_table.shape, x.shape)

    xsz = jnp.dtype(x.dtype).itemsize
    pe = pe_table[:S].astype(x.dtype)          # pre-cast: halves PE traffic, no in-kernel cast

    budget, vmem_limit, prefer_even = _vmem_policy()
    if vmem_budget_bytes is not None:
        budget = vmem_budget_bytes

    cost = pl.CostEstimate(
        flops=S * B * D,
        transcendentals=0,
        bytes_accessed=2 * S * B * D * xsz + S * D * xsz,
    )
    cparams = pltpu.CompilerParams(
        dimension_semantics=("parallel",),
        vmem_limit_bytes=vmem_limit,
    )

    per_row = 2 * B * D * xsz + D * xsz        # x_in + x_out + pe per sequence row
    if seq_tile is not None:
        assert seq_tile == S or seq_tile % 8 == 0, "seq_tile must be S or a multiple of 8"
        st = min(seq_tile, S)
    else:
        st = _choose_seq_tile(S, per_row, budget, prefer_even)

    if st is not None:
        # --- Path A: lane-dense (S, B*D) slab, tiled along the sequence only.
        x2 = x.reshape(S, B * D)
        out2 = pl.pallas_call(
            functools.partial(_pe_add_2d_kernel, batch=B),
            out_shape=jax.ShapeDtypeStruct((S, B * D), x.dtype),
            grid_spec=pltpu.PrefetchScalarGridSpec(
                num_scalar_prefetch=0,
                grid=(pl.cdiv(S, st),),
                in_specs=[
                    pl.BlockSpec((st, B * D), lambda i: (i, 0)),   # activations (lane-dense)
                    pl.BlockSpec((st, D), lambda i: (i, 0)),       # PE rows
                ],
                out_specs=pl.BlockSpec((st, B * D), lambda i: (i, 0)),
            ),
            input_output_aliases={0: 0},
            cost_estimate=cost,
            compiler_params=cparams,
        )(x2, pe)
        return out2.reshape(S, B, D)

    # --- Path B: rows too large for VMEM even at 8 seq rows -> tile batch too.
    st = 8 if S >= 8 else S
    bt_cap = max(0, (budget // 2 - st * D * xsz) // (2 * st * D * xsz))
    bt = B if B <= 8 else min(B, max(8, (bt_cap // 8) * 8))
    out = pl.pallas_call(
        _pe_add_3d_kernel,
        out_shape=jax.ShapeDtypeStruct((S, B, D), x.dtype),
        grid_spec=pltpu.PrefetchScalarGridSpec(
            num_scalar_prefetch=0,
            grid=(pl.cdiv(S, st), pl.cdiv(B, bt)),
            in_specs=[
                pl.BlockSpec((st, bt, D), lambda i, j: (i, j, 0)),
                pl.BlockSpec((st, D), lambda i, j: (i, 0)),
            ],
            out_specs=pl.BlockSpec((st, bt, D), lambda i, j: (i, j, 0)),
        ),
        input_output_aliases={0: 0},
        cost_estimate=cost,
        compiler_params=pltpu.CompilerParams(
            dimension_semantics=("parallel", "parallel"),
            vmem_limit_bytes=vmem_limit,
        ),
    )(x, pe)
    return out


# ---------------------------------------------------------------------------
# Reference & tests
# ---------------------------------------------------------------------------
def _reference(x, pe_table):
    S = x.shape[0]
    return x + pe_table[:S][:, None, :].astype(x.dtype)


if __name__ == "__main__":
    key = jax.random.PRNGKey(0)

    def check(S, B, D, dtype, atol, rtol, **kwargs):
        k = jax.random.fold_in(key, S * 100000 + B * 1000 + D)
        x = jax.random.normal(k, (S, B, D), dtype=dtype)
        pe = make_pe_table(D, max_len=max(S, 64))
        ref = _reference(x, pe)                 # compute before the call (x may be aliased)
        out = jax.block_until_ready(positional_encoding(x, pe, **kwargs))
        assert out.shape == (S, B, D)
        ok = jnp.allclose(out.astype(jnp.float32), ref.astype(jnp.float32),
                          atol=atol, rtol=rtol)
        assert ok, f"mismatch vs reference at shape {(S, B, D)} dtype {dtype} ({kwargs})"

    # Shape implied by the module's forward: (seq, batch, d_model)
    check(8, 2, 32, jnp.float32, atol=1e-5, rtol=1e-5)
    # Larger lane-dense shape exercising bf16 broadcast-add (multi-step on v7x)
    check(64, 4, 128, jnp.bfloat16, atol=2e-2, rtol=2e-2)
    # Force the huge-row fallback path (batch-tiled, 2-D grid) with a tiny budget
    check(16, 16, 128, jnp.float32, atol=1e-5, rtol=1e-5, vmem_budget_bytes=32 << 10)
    # Ragged seq tiling (S not a multiple of the tile)
    check(24, 2, 128, jnp.float32, atol=1e-5, rtol=1e-5, seq_tile=16)

    print("KERNEL_OK")
</pallas_src>

<mosaic_0001>
module attributes {stable_mosaic.version = 11 : i64} {
  func.func @_pe_add_2d_kernel(%arg0: i32, %arg1: memref<8x64xf32, #tpu.memory_space<vmem>>, %arg2: memref<8x32xf32, #tpu.memory_space<vmem>>, %arg3: memref<8x64xf32, #tpu.memory_space<vmem>>) attributes {dimension_semantics = [#tpu.dimension_semantics<parallel>], iteration_bounds = array<i64: 1>, scalar_prefetch = 0 : i64, scratch_operands = 0 : i64, tpu.core_type = #tpu.core_type<tc>, window_params = [{transform_indices = @transform_0, window_bounds = array<i64: 8, 64>}, {transform_indices = @transform_1, window_bounds = array<i64: 8, 32>}, {transform_indices = @transform_2, window_bounds = array<i64: 8, 64>}]} {
    %c0 = arith.constant 0 : index
    %c0_0 = arith.constant 0 : index
    %0 = vector.load %arg1[%c0, %c0_0] : memref<8x64xf32, #tpu.memory_space<vmem>>, vector<8x64xf32>
    %c0_1 = arith.constant 0 : index
    %c0_2 = arith.constant 0 : index
    %1 = vector.load %arg2[%c0_1, %c0_2] : memref<8x32xf32, #tpu.memory_space<vmem>>, vector<8x32xf32>
    %2 = tpu.concatenate %1, %1 in 1 : vector<8x32xf32>, vector<8x32xf32> -> vector<8x64xf32>
    %3 = arith.addf %0, %2 : vector<8x64xf32>
    %c0_3 = arith.constant 0 : index
    %c0_4 = arith.constant 0 : index
    %4 = vector.load %arg3[%c0_3, %c0_4] : memref<8x64xf32, #tpu.memory_space<vmem>>, vector<8x64xf32>
    tpu.vector_store %arg3[%c0_3, %c0_4], %3 {strides = array<i32>} : memref<8x64xf32, #tpu.memory_space<vmem>>, vector<8x64xf32>,
    return
  }
  func.func @transform_0(%arg0: i32) -> (i32, i32) {
    %c0_i32 = arith.constant 0 : i32
    %c0_i32_0 = arith.constant 0 : i32
    return %arg0, %c0_i32 : i32, i32
  }
  func.func @transform_1(%arg0: i32) -> (i32, i32) {
    %c0_i32 = arith.constant 0 : i32
    %c0_i32_0 = arith.constant 0 : i32
    return %arg0, %c0_i32 : i32, i32
  }
  func.func @transform_2(%arg0: i32) -> (i32, i32) {
    %c0_i32 = arith.constant 0 : i32
    %c0_i32_0 = arith.constant 0 : i32
    return %arg0, %c0_i32 : i32, i32
  }
}

</mosaic_0001>

<llo_original>
// kernel: tpu_custom_call.1
$region0: #{tpu_custom_call.1}
  #allocation0 [shape = 'u32[]', space=smem, size = 0x4, offset = 0x4, fixed_abs, tag = 'smem constant byte address 0x4 - core index']
  #allocation1 [shape = 'u32[144,128]{1,0:T(1,128)}', space=vmem, size = 0x12000, scoped, tag = 'internal scratch']
  %s0 = inlined_call_operand.hbm [shape: f32[8,64], index: 0, kind: input, shape index: {}, may-alias: {0,2}]
  %s1 = inlined_call_operand.vmem [shape: f32[8,32], index: 1, kind: input, shape index: {}]
  %s2 = inlined_call_operand.hbm [shape: f32[8,64], index: 2, kind: output, shape index: {}, may-alias: {0,2}]
  %s3 = sld [smem:[#allocation0]]
  $region22: #{tpu_custom_call.1} parent=0
    _
  %s5 = ssub.s32 1, %s3
  %s6 = scalar_select 0, %s5, %s3
  $region1: #{tpu_custom_call.1} parent=0
    #allocation2 [shape = 'u8[4096]{0}', space=vmem, size = 0x1000, scoped, tag = 'input window, operand 0, single buffered']
    #allocation3 [shape = 's32[1]{0}', space=sflag, size = 0x4, scoped, tag = 'scoped memory for tpu_custom_call.1']
    #allocation4 [shape = 's32[1]{0}', space=sflag, size = 0x4, scoped, tag = 'scoped memory for tpu_custom_call.1']
    #allocation5 [shape = 'u8[4096]{0}', space=vmem, size = 0x1000, scoped, tag = 'output window, operand 0, single buffered']
    %7 = vsyncpa [#allocation3], 0
    %8 = vsyncpa [#allocation4], 0
    // Predicated region
    $region2: #{tpu_custom_call.1} parent=1 // pred_check
      _
    $region3: #{tpu_custom_call.1} parent=1 // pred_check_branch
      %10 = sbr.rel (0) target = $region5
    $region4: #{tpu_custom_call.1} parent=1 // pred_region
      %s12 = ssub.s32 128, 128
      %13 = vsyncadd [#allocation3], %s12
      %s15 = sshll.u32 [#allocation2], 4
      %s16 = int_to_ptr.vmem [resolvable:$true] %s15
      %18 = dma.hbm_to_vmem [thread:$0]  %s0, 128, %s16, [#allocation3]
    $region5: #{tpu_custom_call.1} parent=1 // pred_fallthru
      _
    // Predicated region
    $region6: #{tpu_custom_call.1} parent=1 // pred_check
      _
    $region7: #{tpu_custom_call.1} parent=1 // pred_check_branch
      %20 = sbr.rel (0) target = $region9
    $region8: #{tpu_custom_call.1} parent=1 // pred_region
      _
    $region9: #{tpu_custom_call.1} parent=1 // pred_fallthru
      _
    // Predicated region
    $region10: #{tpu_custom_call.1} parent=1 // pred_check
      _
    $region11: #{tpu_custom_call.1} parent=1 // pred_check_branch
      %22 = sbr.rel (0) target = $region13
    $region12: #{tpu_custom_call.1} parent=1 // pred_region
      %23 = dma.done [#allocation3], 128
    $region13: #{tpu_custom_call.1} parent=1 // pred_fallthru
      _
    %v24 = vld [vmem:[#allocation2] sm:$0xff]
    %v25 = vld [vmem:[%s1] sm:$0xff]
    %27 = vrot.lane.b32.xlu0 %v25, 32
    %v28 = vpop.permute.xlu0 %27
    %vm30 = vcmask 261120
    %v31 = vsel %vm30, %v25, %v28
    %v32 = vadd.f32 %v24, %v31
    %vm33 = vcmask 523264
    %34 = vst.msk [vmem:[#allocation5] sm:$0xff] %vm33, %v32
    // Predicated region
    $region14: #{tpu_custom_call.1} parent=1 // pred_check
      _
    $region15: #{tpu_custom_call.1} parent=1 // pred_check_branch
      %36 = sbr.rel (0) target = $region17
    $region16: #{tpu_custom_call.1} parent=1 // pred_region
      %s38 = ssub.s32 128, 128
      %39 = vsyncadd [#allocation4], %s38
      %s41 = sshll.u32 [#allocation5], 4
      %s42 = int_to_ptr.vmem [resolvable:$true] %s41
      %44 = dma.vmem_to_hbm [thread:$0]  %s42, 128, %s2, [#allocation4]
    $region17: #{tpu_custom_call.1} parent=1 // pred_fallthru
      _
    // Predicated region
    $region18: #{tpu_custom_call.1} parent=1 // pred_check
      _
    $region19: #{tpu_custom_call.1} parent=1 // pred_check_branch
      %46 = sbr.rel (0) target = $region21
    $region20: #{tpu_custom_call.1} parent=1 // pred_region
      %47 = dma.done [#allocation4], 128
    $region21: #{tpu_custom_call.1} parent=1 // pred_fallthru
      _
    %48 = vsyncpa [#allocation3], 1
    %49 = vsyncpa [#allocation4], 1

</llo_original>
